<compile_context>
chip_gen: v7x
topology: tpu7x:2x2x1
jax: 0.10.0
libtpu: 0.0.40
codegen_flags: <defaults>
</compile_context>

<pallas_src>
import random

import numpy as np
import jax
import jax.numpy as jnp
from jax import lax
from jax.experimental import pallas as pl
from jax.experimental.pallas import tpu as pltpu

_EPS = 1e-6
_LANE = 128
_SUBLANE = 8


def _round_up(x: int, m: int) -> int:
    return ((x + m - 1) // m) * m


# ----------------------------------------------------------------------------
# Pallas kernel: masked cosine-hinge partial sum for one (TB, D) row tile
# ----------------------------------------------------------------------------
def _make_triplet_hinge_kernel(margin: float, num_rows: int, block_rows: int,
                               eps: float = _EPS):
    eps2 = np.float32(eps * eps)
    margin = np.float32(margin)

    def kernel(a_ref, p_ref, n_ref, o_ref):
        # Inputs arrive in their native dtype (bf16 halves HBM traffic); all
        # math is done in f32, so no bf16 VPU is required (v5e-safe).
        a = a_ref[...].astype(jnp.float32)
        p = p_ref[...].astype(jnp.float32)
        n = n_ref[...].astype(jnp.float32)

        # Anchor inverse norm computed ONCE and shared by both cosine terms.
        # max(sqrt(x), eps) == sqrt(max(x, eps^2))  ->  EUP rsqrt + VPU multiply.
        inv_a = lax.rsqrt(jnp.maximum(jnp.sum(a * a, axis=1, keepdims=True), eps2))
        inv_p = lax.rsqrt(jnp.maximum(jnp.sum(p * p, axis=1, keepdims=True), eps2))
        inv_n = lax.rsqrt(jnp.maximum(jnp.sum(n * n, axis=1, keepdims=True), eps2))

        cos_ap = jnp.sum(a * p, axis=1, keepdims=True) * (inv_a * inv_p)
        cos_an = jnp.sum(a * n, axis=1, keepdims=True) * (inv_a * inv_n)

        hinge = jnp.maximum(cos_ap - cos_an + margin, 0.0)        # (TB, 1)

        # Rows >= num_rows belong to the ragged last tile and hold stale /
        # undefined data (rsqrt of garbage may be NaN/Inf); mask them out
        # BEFORE the in-kernel reduction so the mean is unbiased.
        row = (pl.program_id(0) * block_rows
               + lax.broadcasted_iota(jnp.int32, hinge.shape, 0))
        hinge = jnp.where(row < num_rows, hinge, 0.0)

        # One lane-dense (8,128) partial-sum block per tile (grid stays
        # "parallel"; no per-row (B,1) masked-store column round-trip).
        o_ref[...] = jnp.full(o_ref.shape, jnp.sum(hinge), dtype=jnp.float32)

    return kernel


def _choose_block_rows(B: int, D: int, itemsize: int, block_rows=None) -> int:
    """Bandwidth-aware row tile: big enough that each grid step streams several
    MiB (per-step overhead ~0.35 µs; matters most at v7x's 3.2 TB/s HBM), small
    enough that double-buffered inputs fit comfortably in VMEM (64 MiB on v7x),
    while keeping multiple grid steps when B allows (v7x megacore)."""
    if block_rows is None:
        bytes_per_row = max(3 * D * itemsize, 1)        # three operands per row
        tb_target = (6 << 20) // bytes_per_row          # ~6 MiB of input per step
        tb_vmem = (24 << 20) // (2 * bytes_per_row)     # 2x-buffered inputs <= 24 MiB
        tb_floor = (2 << 20) // bytes_per_row           # never below ~2 MiB/step
        tb_tiles = -(-B // 8)                           # aim for >= 8 grid steps
        block_rows = min(tb_target, tb_vmem, max(tb_tiles, tb_floor))
    tb = max(int(block_rows), 16)
    tb = _round_up(tb, 16)                              # bf16 sublane tile is (16,128)
    return min(tb, _round_up(B, 16))


def triplet_loss_pallas(anchor, positive, negative,
                        margin: float = 0.1, block_rows=None):
    """anchor/positive/negative: (B, D) arrays (f32 or bf16) on device.
    Returns the scalar mean hinge loss (float32)."""
    anchor = jnp.asarray(anchor)
    positive = jnp.asarray(positive, dtype=anchor.dtype)
    negative = jnp.asarray(negative, dtype=anchor.dtype)
    B, D = anchor.shape
    itemsize = anchor.dtype.itemsize

    TB = _choose_block_rows(B, D, itemsize, block_rows)
    num_tiles = pl.cdiv(B, TB)

    kernel = _make_triplet_hinge_kernel(float(margin), B, TB)

    # VMEM limit: what the pipeline actually needs (+ headroom), capped at ~75%
    # of this chip's physical VMEM (64 MiB on v7x, 128 MiB on v5e/v6e).
    needed = 2 * (3 * TB * D * itemsize) + 2 * (_SUBLANE * _LANE * 4) + (4 << 20)
    try:
        vmem_cap = int(pltpu.get_tpu_info().vmem_capacity_bytes)
    except Exception:
        vmem_cap = 64 << 20
    vmem_limit = int(min(max(needed, 16 << 20), (vmem_cap * 3) // 4))

    partials = pl.pallas_call(
        kernel,
        out_shape=jax.ShapeDtypeStruct((num_tiles, _SUBLANE, _LANE), jnp.float32),
        grid_spec=pltpu.PrefetchScalarGridSpec(
            num_scalar_prefetch=0,
            grid=(num_tiles,),
            in_specs=[
                pl.BlockSpec((TB, D), lambda i: (i, 0)),   # full-D block: no pad
                pl.BlockSpec((TB, D), lambda i: (i, 0)),
                pl.BlockSpec((TB, D), lambda i: (i, 0)),
            ],
            out_specs=pl.BlockSpec((1, _SUBLANE, _LANE), lambda i: (i, 0, 0)),
        ),
        compiler_params=pltpu.CompilerParams(
            dimension_semantics=("parallel",),
            vmem_limit_bytes=vmem_limit,
        ),
        cost_estimate=pl.CostEstimate(
            flops=10 * B * D,                    # 5 (B,D) mul-add reductions
            transcendentals=3 * B,               # one rsqrt per row per operand
            bytes_accessed=3 * B * D * itemsize + num_tiles * _SUBLANE * _LANE * 4,
        ),
    )(anchor, positive, negative)

    # Each tile broadcast-stored its masked partial sum into one (8,128) block.
    return jnp.sum(partials[:, 0, 0]) / np.float32(B)


# ----------------------------------------------------------------------------
# Host-side triplet *index* sampling (mirrors _selTripletSamples semantics).
# TODO(synk): stochastic, data-dependent triplet selection (random.sample /
# np.setdiff1d over the label matrix) has no clean Pallas equivalent; it stays
# on host and emits only int32 indices — the feature gathers run on device.
# ----------------------------------------------------------------------------
def sel_triplet_indices(gt_np: np.ndarray, seed: int = 0):
    rng = random.Random(seed)
    row_sums = gt_np.sum(axis=1)
    idxs_a = np.where(row_sums > 0)[0]        # "disease" samples -> anchors
    idxs_n = np.where(row_sums == 0)[0]       # "normal" samples

    a_idx, p_idx, n_idx = [], [], []

    for id_a in idxs_a:
        a_idx.append(int(id_a))
        cols = np.where(gt_np[id_a] == 1)[0]
        # Row index per True element (with duplicates) -> same sampling
        # distribution as torch.where(gt[:, cols] == 1)[0].
        rows = np.where(gt_np[:, cols] == 1)[0]
        p_idx.append(int(rng.sample(list(rows), 1)[0]))
        other = np.setdiff1d(idxs_a, rows)
        other = np.union1d(other, idxs_n)
        n_idx.append(int(rng.sample(list(other), 1)[0]))

    for id_a in idxs_n:
        a_idx.append(int(id_a))
        p_idx.append(int(rng.sample(list(idxs_n), 1)[0]))
        n_idx.append(int(rng.sample(list(idxs_a), 1)[0]))

    return (np.asarray(a_idx, np.int32),
            np.asarray(p_idx, np.int32),
            np.asarray(n_idx, np.int32))


def triplet_ranking_loss(pred, gt, margin: float = 0.1, seed: int = 0,
                         block_rows=None):
    """Full forward: host-side index sampling + device gathers + Pallas loss."""
    gt_np = np.array(gt, dtype=np.float32)             # writable host copy
    a_idx, p_idx, n_idx = sel_triplet_indices(gt_np, seed=seed)

    pred = jnp.asarray(pred)                            # stays on device, native dtype
    B = pred.shape[0]

    # a_idx enumerates every row exactly once (disease rows then normal rows),
    # i.e. it is a permutation of range(B); the mean over triplets is
    # permutation invariant.  Reorder positive/negative indices into original
    # row order and use `pred` itself as the anchor operand: removes one full
    # (B, D) gather (HBM write + re-read) from a bandwidth-bound path.
    pos_of = np.empty(B, dtype=np.int32)
    neg_of = np.empty(B, dtype=np.int32)
    pos_of[a_idx] = p_idx
    neg_of[a_idx] = n_idx

    # NOTE: for large D (>= ~512 f32 per row) the two remaining gathers could
    # be fused into the kernel (pred kept in HBM via memory_space=pl.ANY,
    # scalar-prefetched indices, manual double-buffered row DMAs); for small D
    # the XLA gather is the better choice.
    positive = jnp.take(pred, jnp.asarray(pos_of), axis=0)
    negative = jnp.take(pred, jnp.asarray(neg_of), axis=0)
    return triplet_loss_pallas(pred, positive, negative,
                               margin=margin, block_rows=block_rows)


# ----------------------------------------------------------------------------
# Pure-numpy reference for sanity checks (same sampled indices)
# ----------------------------------------------------------------------------
def _ref_loss(a, p, n, margin=0.1, eps=_EPS):
    a = np.asarray(a, np.float32); p = np.asarray(p, np.float32); n = np.asarray(n, np.float32)

    def cos(x, y):
        dot = np.sum(x * y, axis=1)
        nx = np.sqrt(np.sum(x * x, axis=1))
        ny = np.sqrt(np.sum(y * y, axis=1))
        return dot / (np.maximum(nx, eps) * np.maximum(ny, eps))

    cos_v = cos(a, p) - cos(a, n) + margin
    return float(np.mean(np.where(cos_v < 0, 0.0, cos_v)))


if __name__ == "__main__":
    # Small shapes: batch=8 samples, feature dim=32, 4 classes (multi-label gt).
    key = jax.random.PRNGKey(0)
    k_pred, k_gt = jax.random.split(key)

    B, D, C = 8, 32, 4
    pred = jax.random.normal(k_pred, (B, D), dtype=jnp.float32)

    # Build gt so that both "disease" (row-sum > 0) and "normal" (row-sum == 0)
    # samples exist (the forward requires both sets to be non-empty).
    gt_rand = (jax.random.uniform(k_gt, (B, C)) > 0.6).astype(jnp.float32)
    gt_np = np.array(gt_rand, dtype=np.float32)
    gt_np[0] = np.array([1, 0, 0, 0], dtype=np.float32)   # ensure an anchor
    gt_np[B - 1] = np.zeros((C,), dtype=np.float32)       # ensure a normal
    gt = jnp.asarray(gt_np)

    # --- main f32 path --------------------------------------------------------
    loss = triplet_ranking_loss(pred, gt, margin=0.1, seed=0)
    loss = jax.block_until_ready(loss)

    pred_np = np.array(pred, dtype=np.float32)
    a_idx, p_idx, n_idx = sel_triplet_indices(gt_np, seed=0)
    ref = _ref_loss(pred_np[a_idx], pred_np[p_idx], pred_np[n_idx], margin=0.1)
    assert abs(float(loss) - ref) < 1e-4, (float(loss), ref)

    # --- bf16 path: native-dtype DMA + in-kernel upcast ----------------------
    loss_bf16 = triplet_ranking_loss(pred.astype(jnp.bfloat16), gt, margin=0.1, seed=0)
    loss_bf16 = jax.block_until_ready(loss_bf16)
    assert np.isfinite(float(loss_bf16)) and abs(float(loss_bf16) - ref) < 5e-2, \
        (float(loss_bf16), ref)

    # --- multi-tile + ragged-edge masking check (forced small tile) ----------
    B2, D2 = 40, 32
    k1, k2, k3 = jax.random.split(jax.random.PRNGKey(1), 3)
    a2 = jax.random.normal(k1, (B2, D2), dtype=jnp.float32)
    p2 = jax.random.normal(k2, (B2, D2), dtype=jnp.float32)
    n2 = jax.random.normal(k3, (B2, D2), dtype=jnp.float32)
    out2 = jax.block_until_ready(
        triplet_loss_pallas(a2, p2, n2, margin=0.1, block_rows=16))  # 3 tiles, last ragged
    ref2 = _ref_loss(np.array(a2), np.array(p2), np.array(n2), margin=0.1)
    assert abs(float(out2) - ref2) < 1e-4, (float(out2), ref2)

    print("KERNEL_OK")
</pallas_src>

<mosaic_0001>
module attributes {stable_mosaic.version = 11 : i64} {
  func.func @kernel(%arg0: i32, %arg1: memref<16x32xf32, #tpu.memory_space<vmem>>, %arg2: memref<16x32xf32, #tpu.memory_space<vmem>>, %arg3: memref<16x32xf32, #tpu.memory_space<vmem>>, %arg4: memref<1x8x128xf32, #tpu.memory_space<vmem>>) attributes {dimension_semantics = [#tpu.dimension_semantics<parallel>], iteration_bounds = array<i64: 1>, scalar_prefetch = 0 : i64, scratch_operands = 0 : i64, tpu.core_type = #tpu.core_type<tc>, window_params = [{transform_indices = @transform_0, window_bounds = array<i64: 16, 32>}, {transform_indices = @transform_1, window_bounds = array<i64: 16, 32>}, {transform_indices = @transform_2, window_bounds = array<i64: 16, 32>}, {transform_indices = @transform_3, window_bounds = array<i64: 1, 8, 128>}]} {
    %c0 = arith.constant 0 : index
    %c0_0 = arith.constant 0 : index
    %0 = vector.load %arg1[%c0, %c0_0] : memref<16x32xf32, #tpu.memory_space<vmem>>, vector<16x32xf32>
    %c0_1 = arith.constant 0 : index
    %c0_2 = arith.constant 0 : index
    %1 = vector.load %arg2[%c0_1, %c0_2] : memref<16x32xf32, #tpu.memory_space<vmem>>, vector<16x32xf32>
    %c0_3 = arith.constant 0 : index
    %c0_4 = arith.constant 0 : index
    %2 = vector.load %arg3[%c0_3, %c0_4] : memref<16x32xf32, #tpu.memory_space<vmem>>, vector<16x32xf32>
    %3 = arith.mulf %0, %0 : vector<16x32xf32>
    %cst = arith.constant dense<0.000000e+00> : vector<16xf32>
    %4 = vector.multi_reduction <add>, %3, %cst [1] : vector<16x32xf32> to vector<16xf32>
    %5 = vector.shape_cast %4 : vector<16xf32> to vector<16x1xf32>
    %cst_5 = arith.constant 9.99999996E-13 : f32
    %6 = vector.broadcast %cst_5 : f32 to vector<16x1xf32>
    %7 = arith.maximumf %5, %6 : vector<16x1xf32>
    %8 = math.rsqrt %7 : vector<16x1xf32>
    %9 = arith.mulf %1, %1 : vector<16x32xf32>
    %cst_6 = arith.constant dense<0.000000e+00> : vector<16xf32>
    %10 = vector.multi_reduction <add>, %9, %cst_6 [1] : vector<16x32xf32> to vector<16xf32>
    %11 = vector.shape_cast %10 : vector<16xf32> to vector<16x1xf32>
    %cst_7 = arith.constant 9.99999996E-13 : f32
    %12 = vector.broadcast %cst_7 : f32 to vector<16x1xf32>
    %13 = arith.maximumf %11, %12 : vector<16x1xf32>
    %14 = math.rsqrt %13 : vector<16x1xf32>
    %15 = arith.mulf %2, %2 : vector<16x32xf32>
    %cst_8 = arith.constant dense<0.000000e+00> : vector<16xf32>
    %16 = vector.multi_reduction <add>, %15, %cst_8 [1] : vector<16x32xf32> to vector<16xf32>
    %17 = vector.shape_cast %16 : vector<16xf32> to vector<16x1xf32>
    %cst_9 = arith.constant 9.99999996E-13 : f32
    %18 = vector.broadcast %cst_9 : f32 to vector<16x1xf32>
    %19 = arith.maximumf %17, %18 : vector<16x1xf32>
    %20 = math.rsqrt %19 : vector<16x1xf32>
    %21 = arith.mulf %0, %1 : vector<16x32xf32>
    %cst_10 = arith.constant dense<0.000000e+00> : vector<16xf32>
    %22 = vector.multi_reduction <add>, %21, %cst_10 [1] : vector<16x32xf32> to vector<16xf32>
    %23 = vector.shape_cast %22 : vector<16xf32> to vector<16x1xf32>
    %24 = arith.mulf %8, %14 : vector<16x1xf32>
    %25 = arith.mulf %23, %24 : vector<16x1xf32>
    %26 = arith.mulf %0, %2 : vector<16x32xf32>
    %cst_11 = arith.constant dense<0.000000e+00> : vector<16xf32>
    %27 = vector.multi_reduction <add>, %26, %cst_11 [1] : vector<16x32xf32> to vector<16xf32>
    %28 = vector.shape_cast %27 : vector<16xf32> to vector<16x1xf32>
    %29 = arith.mulf %8, %20 : vector<16x1xf32>
    %30 = arith.mulf %28, %29 : vector<16x1xf32>
    %31 = arith.subf %25, %30 : vector<16x1xf32>
    %cst_12 = arith.constant 1.000000e-01 : f32
    %32 = vector.broadcast %cst_12 : f32 to vector<16x1xf32>
    %33 = arith.addf %31, %32 : vector<16x1xf32>
    %cst_13 = arith.constant 0.000000e+00 : f32
    %34 = vector.broadcast %cst_13 : f32 to vector<16x1xf32>
    %35 = arith.maximumf %33, %34 : vector<16x1xf32>
    %c16_i32 = arith.constant 16 : i32
    %36 = arith.muli %arg0, %c16_i32 : i32
    %37 = tpu.iota {dimensions = array<i32: 0>} : vector<16x1xi32>
    %38 = vector.broadcast %36 : i32 to vector<16x1xi32>
    %39 = arith.addi %38, %37 : vector<16x1xi32>
    %c8_i32 = arith.constant 8 : i32
    %40 = vector.broadcast %c8_i32 : i32 to vector<16x1xi32>
    %41 = arith.cmpi slt, %39, %40 : vector<16x1xi32>
    %cst_14 = arith.constant 0.000000e+00 : f32
    %42 = vector.broadcast %cst_14 : f32 to vector<16x1xf32>
    %43 = arith.select %41, %35, %42 : vector<16x1xi1>, vector<16x1xf32>
    %44 = vector.shape_cast %43 : vector<16x1xf32> to vector<1x16x1xf32>
    %cst_15 = arith.constant dense<0.000000e+00> : vector<1xf32>
    %45 = vector.multi_reduction <add>, %44, %cst_15 [1, 2] : vector<1x16x1xf32> to vector<1xf32>
    %46 = vector.shape_cast %45 : vector<1xf32> to vector<1x1x1xf32>
    %47 = vector.extract %46[0, 0, 0] : f32 from vector<1x1x1xf32>
    %48 = vector.broadcast %47 : f32 to vector<1x8x128xf32>
    %c0_16 = arith.constant 0 : index
    %c0_17 = arith.constant 0 : index
    %c0_18 = arith.constant 0 : index
    %49 = vector.load %arg4[%c0_16, %c0_17, %c0_18] : memref<1x8x128xf32, #tpu.memory_space<vmem>>, vector<1x8x128xf32>
    tpu.vector_store %arg4[%c0_16, %c0_17, %c0_18], %48 {strides = array<i32>} : memref<1x8x128xf32, #tpu.memory_space<vmem>>, vector<1x8x128xf32>,
    return
  }
  func.func @transform_0(%arg0: i32) -> (i32, i32) {
    %c0_i32 = arith.constant 0 : i32
    %c0_i32_0 = arith.constant 0 : i32
    return %arg0, %c0_i32 : i32, i32
  }
  func.func @transform_1(%arg0: i32) -> (i32, i32) {
    %c0_i32 = arith.constant 0 : i32
    %c0_i32_0 = arith.constant 0 : i32
    return %arg0, %c0_i32 : i32, i32
  }
  func.func @transform_2(%arg0: i32) -> (i32, i32) {
    %c0_i32 = arith.constant 0 : i32
    %c0_i32_0 = arith.constant 0 : i32
    return %arg0, %c0_i32 : i32, i32
  }
  func.func @transform_3(%arg0: i32) -> (i32, i32, i32) {
    %c0_i32 = arith.constant 0 : i32
    %c0_i32_0 = arith.constant 0 : i32
    %c0_i32_1 = arith.constant 0 : i32
    return %arg0, %c0_i32, %c0_i32_0 : i32, i32, i32
  }
}

</mosaic_0001>

<llo_original>
// kernel: tpu_custom_call.1
$region0: #{tpu_custom_call.1}
  #allocation0 [shape = 'u32[]', space=smem, size = 0x4, offset = 0x4, fixed_abs, tag = 'smem constant byte address 0x4 - core index']
  #allocation1 [shape = 'u32[144,128]{1,0:T(1,128)}', space=vmem, size = 0x12000, scoped, tag = 'internal scratch']
  %s0 = inlined_call_operand.hbm [shape: f32[8,32], index: 0, kind: input, shape index: {}]
  %s1 = inlined_call_operand.hbm [shape: f32[8,32], index: 1, kind: input, shape index: {}]
  %s2 = inlined_call_operand.hbm [shape: f32[8,32], index: 2, kind: input, shape index: {}]
  %s3 = inlined_call_operand.hbm [shape: f32[1,8,128], index: 3, kind: output, shape index: {}]
  %s4 = sld [smem:[#allocation0]]
  $region34: #{tpu_custom_call.1} parent=0
    _
  %s6 = ssub.s32 1, %s4
  %s7 = scalar_select 0, %s6, %s4
  $region1: #{tpu_custom_call.1} parent=0
    #allocation2 [shape = 'u8[8192]{0}', space=vmem, size = 0x2000, scoped, tag = 'input window, operand 0, single buffered']
    #allocation3 [shape = 's32[1]{0}', space=sflag, size = 0x4, scoped, tag = 'scoped memory for tpu_custom_call.1']
    #allocation4 [shape = 's32[1]{0}', space=sflag, size = 0x4, scoped, tag = 'scoped memory for tpu_custom_call.1']
    #allocation5 [shape = 'u8[8192]{0}', space=vmem, size = 0x2000, scoped, tag = 'input window, operand 1, single buffered']
    #allocation6 [shape = 's32[1]{0}', space=sflag, size = 0x4, scoped, tag = 'scoped memory for tpu_custom_call.1']
    #allocation7 [shape = 'u8[8192]{0}', space=vmem, size = 0x2000, scoped, tag = 'input window, operand 2, single buffered']
    #allocation8 [shape = 'u8[4096]{0}', space=vmem, size = 0x1000, scoped, tag = 'output window, operand 0, single buffered']
    %8 = vsyncpa [#allocation3], 0
    %9 = vsyncpa [#allocation6], 0
    %10 = vsyncpa [#allocation4], 0
    // Predicated region
    $region2: #{tpu_custom_call.1} parent=1 // pred_check
      _
    $region3: #{tpu_custom_call.1} parent=1 // pred_check_branch
      %12 = sbr.rel (0) target = $region5
    $region4: #{tpu_custom_call.1} parent=1 // pred_region
      %s14 = ssub.s32 256, 128
      %15 = vsyncadd [#allocation3], %s14
      %s16 = sshll.u32 [#allocation2], 4
      %s17 = int_to_ptr.vmem [resolvable:$true] %s16
      %22 = dma.hbm_to_vmem [thread:$0]  %s0, 128, %s17, [#allocation3], 128, 128, 8
    $region5: #{tpu_custom_call.1} parent=1 // pred_fallthru
      _
    // Predicated region
    $region6: #{tpu_custom_call.1} parent=1 // pred_check
      _
    $region7: #{tpu_custom_call.1} parent=1 // pred_check_branch
      %24 = sbr.rel (0) target = $region9
    $region8: #{tpu_custom_call.1} parent=1 // pred_region
      %s26 = ssub.s32 256, 128
      %27 = vsyncadd [#allocation6], %s26
      %s28 = sshll.u32 [#allocation5], 4
      %s29 = int_to_ptr.vmem [resolvable:$true] %s28
      %34 = dma.hbm_to_vmem [thread:$0]  %s1, 128, %s29, [#allocation6], 128, 128, 8
    $region9: #{tpu_custom_call.1} parent=1 // pred_fallthru
      _
    // Predicated region
    $region10: #{tpu_custom_call.1} parent=1 // pred_check
      _
    $region11: #{tpu_custom_call.1} parent=1 // pred_check_branch
      %36 = sbr.rel (0) target = $region13
    $region12: #{tpu_custom_call.1} parent=1 // pred_region
      %s38 = ssub.s32 256, 128
      %39 = vsyncadd [#allocation6], %s38
      %s40 = sshll.u32 [#allocation7], 4
      %s41 = int_to_ptr.vmem [resolvable:$true] %s40
      %46 = dma.hbm_to_vmem [thread:$0]  %s2, 128, %s41, [#allocation6], 128, 128, 8
    $region13: #{tpu_custom_call.1} parent=1 // pred_fallthru
      _
    // Predicated region
    $region14: #{tpu_custom_call.1} parent=1 // pred_check
      _
    $region15: #{tpu_custom_call.1} parent=1 // pred_check_branch
      %48 = sbr.rel (0) target = $region17
    $region16: #{tpu_custom_call.1} parent=1 // pred_region
      %49 = dma.done [#allocation3], 256
    $region17: #{tpu_custom_call.1} parent=1 // pred_fallthru
      _
    // Predicated region
    $region18: #{tpu_custom_call.1} parent=1 // pred_check
      _
    $region19: #{tpu_custom_call.1} parent=1 // pred_check_branch
      %51 = sbr.rel (0) target = $region21
    $region20: #{tpu_custom_call.1} parent=1 // pred_region
      %52 = dma.done [#allocation6], 256
    $region21: #{tpu_custom_call.1} parent=1 // pred_fallthru
      _
    // Predicated region
    $region22: #{tpu_custom_call.1} parent=1 // pred_check
      _
    $region23: #{tpu_custom_call.1} parent=1 // pred_check_branch
      %54 = sbr.rel (0) target = $region25
    $region24: #{tpu_custom_call.1} parent=1 // pred_region
      %55 = dma.done [#allocation6], 256
    $region25: #{tpu_custom_call.1} parent=1 // pred_fallthru
      _
    %v56 = vld [vmem:[#allocation2] sm:$0xff]
    %v57 = vld [vmem:[#allocation2 + $0x8] sm:$0xff]
    %v58 = vld [vmem:[#allocation5] sm:$0xff]
    %v59 = vld [vmem:[#allocation5 + $0x8] sm:$0xff]
    %v60 = vld [vmem:[#allocation7] sm:$0xff]
    %v61 = vld [vmem:[#allocation7 + $0x8] sm:$0xff]
    %v62 = vmul.f32 %v56, %v56
    %v63 = vmul.f32 %v57, %v57
    %vm64 = vcmask 261120
    %v65 = vsel %vm64, %v62, 0.0
    %66 = vadd.xlane.f32.xlu0 %v65
    %v67 = vpop.xlane.xlu0 %66
    %v68 = vsel %vm64, %v63, 0.0
    %69 = vadd.xlane.f32.xlu0 %v68
    %v70 = vpop.xlane.xlu0 %69
    %v71 = vmax.f32 %v67, 1e-12
    %v72 = vmax.f32 %v70, 1e-12
    %v73 = vrsqrt.pop %v71
    %v74 = vrsqrt.pop %v72
    %v75 = vmul.f32 %v58, %v58
    %v76 = vmul.f32 %v59, %v59
    %v77 = vsel %vm64, %v75, 0.0
    %78 = vadd.xlane.f32.xlu0 %v77
    %v79 = vpop.xlane.xlu0 %78
    %v80 = vsel %vm64, %v76, 0.0
    %81 = vadd.xlane.f32.xlu0 %v80
    %v82 = vpop.xlane.xlu0 %81
    %v83 = vmax.f32 %v79, 1e-12
    %v84 = vmax.f32 %v82, 1e-12
    %v85 = vrsqrt.pop %v83
    %v86 = vrsqrt.pop %v84
    %v87 = vmul.f32 %v60, %v60
    %v88 = vmul.f32 %v61, %v61
    %v89 = vsel %vm64, %v87, 0.0
    %90 = vadd.xlane.f32.xlu0 %v89
    %v91 = vpop.xlane.xlu0 %90
    %v92 = vsel %vm64, %v88, 0.0
    %93 = vadd.xlane.f32.xlu0 %v92
    %v94 = vpop.xlane.xlu0 %93
    %v95 = vmax.f32 %v91, 1e-12
    %v96 = vmax.f32 %v94, 1e-12
    %v97 = vrsqrt.pop %v95
    %v98 = vrsqrt.pop %v96
    %v99 = vmul.f32 %v56, %v58
    %v100 = vmul.f32 %v57, %v59
    %v101 = vsel %vm64, %v99, 0.0
    %102 = vadd.xlane.f32.xlu0 %v101
    %v103 = vpop.xlane.xlu0 %102
    %v104 = vsel %vm64, %v100, 0.0
    %105 = vadd.xlane.f32.xlu0 %v104
    %v106 = vpop.xlane.xlu0 %105
    %v107 = vmul.f32 %v73, %v85
    %v108 = vmul.f32 %v74, %v86
    %v109 = vmul.f32 %v103, %v107
    %v110 = vmul.f32 %v106, %v108
    %v111 = vmul.f32 %v56, %v60
    %v112 = vmul.f32 %v57, %v61
    %v113 = vsel %vm64, %v111, 0.0
    %114 = vadd.xlane.f32.xlu0 %v113
    %v115 = vpop.xlane.xlu0 %114
    %v116 = vsel %vm64, %v112, 0.0
    %117 = vadd.xlane.f32.xlu0 %v116
    %v118 = vpop.xlane.xlu0 %117
    %v119 = vmul.f32 %v73, %v97
    %v120 = vmul.f32 %v74, %v98
    %v121 = vmul.f32 %v115, %v119
    %v122 = vmul.f32 %v118, %v120
    %v123 = vsub.f32 %v109, %v121
    %v124 = vsub.f32 %v110, %v122
    %v125 = vadd.f32 %v123, 0.1
    %v126 = vadd.f32 %v124, 0.1
    %v127 = vmax.f32 %v125, 0.0
    %v128 = vmax.f32 %v126, 0.0
    %s129 = smul.u32 0, 16
    %v130 = vlaneseq
    %v131 = vshrl.u32 %v130, 7
    %v132 = vadd.s32 %v131, 8
    %v133 = vstv %s129
    %v134 = vadd.s32 %v133, %v131
    %v135 = vadd.s32 %v133, %v132
    %vm136 = vcmp.lt.s32.totalorder %v134, 8
    %vm137 = vcmp.lt.s32.totalorder %v135, 8
    %v138 = vsel %vm136, %v127, 0.0
    %v139 = vsel %vm137, %v128, 0.0
    %vm140 = vcmask 7168
    %v141 = vsel %vm140, %v138, 0.0
    %v142 = vsel %vm140, %v139, 0.0
    %v143 = vadd.f32 %v141, %v142
    %144 = vadd.xlane.f32.xlu0 %v143
    %v145 = vpop.xlane.xlu0 %144
    %v146 = vrot.slane %v145, 4
    %v147 = vadd.f32 %v145, %v146
    %v148 = vrot.slane %v147, 2
    %v149 = vadd.f32 %v147, %v148
    %v150 = vrot.slane %v149, 1
    %v151 = vadd.f32 %v149, %v150
    %s152 = vtos %v151
    %v153 = vstv %s152
    %154 = vst [vmem:[#allocation8] sm:$0xff] %v153
    // Predicated region
    $region26: #{tpu_custom_call.1} parent=1 // pred_check
      _
    $region27: #{tpu_custom_call.1} parent=1 // pred_check_branch
      %156 = sbr.rel (0) target = $region29
    $region28: #{tpu_custom_call.1} parent=1 // pred_region
      %s158 = ssub.s32 128, 128
      %159 = vsyncadd [#allocation4], %s158
      %s161 = sshll.u32 [#allocation8], 4
      %s162 = int_to_ptr.vmem [resolvable:$true] %s161
      %164 = dma.vmem_to_hbm [thread:$0]  %s162, 128, %s3, [#allocation4]
    $region29: #{tpu_custom_call.1} parent=1 // pred_fallthru
      _
    // Predicated region
    $region30: #{tpu_custom_call.1} parent=1 // pred_check
      _
    $region31: #{tpu_custom_call.1} parent=1 // pred_check_branch
      %166 = sbr.rel (0) target = $region33
    $region32: #{tpu_custom_call.1} parent=1 // pred_region
      %167 = dma.done [#allocation4], 128
    $region33: #{tpu_custom_call.1} parent=1 // pred_fallthru
      _
    %168 = vsyncpa [#allocation3], 1
    %169 = vsyncpa [#allocation6], 1
    %170 = vsyncpa [#allocation4], 1

</llo_original>
